<compile_context>
chip_gen: v6e
topology: v6e:2x2x1
jax: 0.10.0
libtpu: 0.0.40
codegen_flags: <defaults>
</compile_context>

<pallas_src>
import functools
import math

import jax
import jax.numpy as jnp
from jax.experimental import pallas as pl
from jax.experimental.pallas import tpu as pltpu


def _round_up(x: int, m: int) -> int:
    return ((x + m - 1) // m) * m


def _ceil_div(a: int, b: int) -> int:
    return -(-a // b)


def _choose_tile_m(batch: int, tile_m: int) -> int:
    """Balanced batch tile: near-equal tiles, sublane (8) aligned; rounded up
    to 256 rows (MXU row-chunk on v6e/v7x) only when that wastes few rows."""
    n_tiles = _ceil_div(batch, tile_m)
    if n_tiles == 1 and batch > 512:
        n_tiles = 2                 # >=2 grid steps -> v7x megacore batch split
    tm = _round_up(_ceil_div(batch, n_tiles), 8)
    tm_256 = _round_up(tm, 256)
    if n_tiles * tm_256 - batch <= max(batch // 8, 8):
        tm = tm_256                 # cheap MXU row-chunk alignment, low waste
    return max(8, min(tm, _round_up(batch, 8)))


def _actor_kernel(x_ref,
                  w1_ref, b1_ref,
                  w2_ref, b2_ref,
                  w3_ref, b3_ref,
                  w4_ref, b4_ref,
                  out_ref):
    cdt = w1_ref.dtype  # matmul operand dtype (bf16), f32 accumulate/epilogue

    # Layer 1: Linear + ReLU
    h = jnp.dot(x_ref[...].astype(cdt), w1_ref[...],
                preferred_element_type=jnp.float32) + b1_ref[...]
    h = jnp.maximum(h, 0.0)

    # Layer 2: Linear + ReLU
    h = jnp.dot(h.astype(cdt), w2_ref[...],
                preferred_element_type=jnp.float32) + b2_ref[...]
    h = jnp.maximum(h, 0.0)

    # Layer 3: Linear + Hardswish  (x * clamp(x + 3, 0, 6) / 6)
    h = jnp.dot(h.astype(cdt), w3_ref[...],
                preferred_element_type=jnp.float32) + b3_ref[...]
    h = h * jnp.clip(h + 3.0, 0.0, 6.0) * (1.0 / 6.0)

    # Layer 4: Linear + tanh  (narrow action_dim store; masked vst is cheap,
    # HBM writeback is tiny)
    h = jnp.dot(h.astype(cdt), w4_ref[...],
                preferred_element_type=jnp.float32) + b4_ref[...]
    out_ref[...] = jnp.tanh(h).astype(out_ref.dtype)


def prepare_actor_params(params, compute_dtype=jnp.bfloat16):
    """Cast weights/biases to their kernel dtypes ONCE (outside the hot path):
    bf16 matmul operands, f32 (1, out) biases."""
    prepped = {}
    for i in range(1, 5):
        prepped[f"w{i}"] = jnp.asarray(params[f"w{i}"], compute_dtype)
        prepped[f"b{i}"] = jnp.asarray(params[f"b{i}"], jnp.float32).reshape(1, -1)
    return prepped


@functools.partial(jax.jit, static_argnames=("tile_m",))
def actor_forward(state, params, *, tile_m=4096):
    """state: [B, state_dim] float32; params: output of prepare_actor_params.

    Returns [B, action_dim] float32 actions in (-1, 1).
    """
    B, state_dim = state.shape
    mid_dim = params["w1"].shape[1]
    action_dim = params["w4"].shape[1]

    # --- balanced batch tiling; ragged last block is masked by Pallas ---
    tm = _choose_tile_m(B, tile_m)
    grid = (_ceil_div(B, tm),)

    args = (state,
            params["w1"], params["b1"],
            params["w2"], params["b2"],
            params["w3"], params["b3"],
            params["w4"], params["b4"])

    in_specs = [pl.BlockSpec((tm, state_dim), lambda i: (i, 0))]  # streamed state
    for a in args[1:]:
        # Full-array block, constant block index -> stays resident in VMEM.
        in_specs.append(pl.BlockSpec(a.shape, lambda i: (0, 0)))
    out_spec = pl.BlockSpec((tm, action_dim), lambda i: (i, 0))

    n_rows = grid[0] * tm
    flops = 2 * n_rows * (state_dim * mid_dim + 2 * mid_dim * mid_dim
                          + mid_dim * action_dim)
    bytes_accessed = (B * state_dim * 4 + B * action_dim * 4
                      + sum(int(a.size) * a.dtype.itemsize for a in args[1:]))
    cost = pl.CostEstimate(flops=flops,
                           transcendentals=n_rows * action_dim,
                           bytes_accessed=bytes_accessed)

    return pl.pallas_call(
        _actor_kernel,
        out_shape=jax.ShapeDtypeStruct((B, action_dim), jnp.float32),
        grid=grid,
        in_specs=in_specs,
        out_specs=out_spec,
        compiler_params=pltpu.CompilerParams(
            dimension_semantics=("parallel",),   # megacore batch split on v7x
        ),
        cost_estimate=cost,
    )(*args)


def init_actor_params(key, mid_dim, state_dim, action_dim):
    """Deterministic init mimicking PyTorch nn.Linear default:
    U(-1/sqrt(fan_in), 1/sqrt(fan_in)) for both weight and bias.
    Weights stored [in_features, out_features] so the kernel does y = x@W + b."""
    dims = [(state_dim, mid_dim), (mid_dim, mid_dim),
            (mid_dim, mid_dim), (mid_dim, action_dim)]
    params = {}
    for i, (fan_in, fan_out) in enumerate(dims, start=1):
        key, kw, kb = jax.random.split(key, 3)
        bound = 1.0 / math.sqrt(fan_in)
        params[f"w{i}"] = jax.random.uniform(
            kw, (fan_in, fan_out), jnp.float32, -bound, bound)
        params[f"b{i}"] = jax.random.uniform(
            kb, (1, fan_out), jnp.float32, -bound, bound)
    return params


def actor_forward_ref(state, params, compute_dtype=jnp.float32):
    """Pure-JAX reference. With compute_dtype=bfloat16 it mirrors the kernel's
    mixed-precision scheme (bf16 matmul operands, f32 accumulate/epilogue)."""
    def lin(x, w, b):
        return jnp.dot(x.astype(compute_dtype), w.astype(compute_dtype),
                       preferred_element_type=jnp.float32) + b
    h = jnp.maximum(lin(state, params["w1"], params["b1"]), 0.0)
    h = jnp.maximum(lin(h, params["w2"], params["b2"]), 0.0)
    h = lin(h, params["w3"], params["b3"])
    h = h * jnp.clip(h + 3.0, 0.0, 6.0) / 6.0
    h = lin(h, params["w4"], params["b4"])
    return jnp.tanh(h)


if __name__ == "__main__":
    key = jax.random.PRNGKey(0)
    state_dim, mid_dim, action_dim = 16, 32, 4
    params_f32 = init_actor_params(key, mid_dim, state_dim, action_dim)
    params = prepare_actor_params(params_f32)   # one-time cast (bf16 W, f32 b)

    # --- small batch (single grid point) ---
    batch = 8
    key, k_state = jax.random.split(key)
    state = jax.random.normal(k_state, (batch, state_dim), jnp.float32)

    out = jax.block_until_ready(actor_forward(state, params))
    assert out.shape == (batch, action_dim)
    ref_mixed = actor_forward_ref(state, params_f32, compute_dtype=jnp.bfloat16)
    ref_f32 = actor_forward_ref(state, params_f32, compute_dtype=jnp.float32)
    assert jnp.allclose(out, ref_mixed, atol=1e-3, rtol=1e-3)
    assert jnp.allclose(out, ref_f32, atol=5e-2, rtol=5e-2)

    # --- larger, non-divisible batch exercises multi-step grid + masked
    #     ragged last block (no padding / slicing in the wrapper) ---
    big_batch = 2050
    key, k_big = jax.random.split(key)
    big_state = jax.random.normal(k_big, (big_batch, state_dim), jnp.float32)
    big_out = jax.block_until_ready(actor_forward(big_state, params))
    assert big_out.shape == (big_batch, action_dim)
    big_ref = actor_forward_ref(big_state, params_f32, compute_dtype=jnp.bfloat16)
    assert jnp.allclose(big_out, big_ref, atol=1e-3, rtol=1e-3)
    assert bool(jnp.all(jnp.isfinite(big_out)))

    # TODO(synk): get_action (Gaussian exploration noise + clamp) is left to
    # plain JAX on top of actor_forward; not worth a kernel.
    print("KERNEL_OK")
</pallas_src>

<mosaic_0001>
module attributes {stable_mosaic.version = 11 : i64} {
  func.func @_actor_kernel(%arg0: i32, %arg1: memref<8x16xf32, #tpu.memory_space<vmem>>, %arg2: memref<16x32xbf16, #tpu.memory_space<vmem>>, %arg3: memref<1x32xf32, #tpu.memory_space<vmem>>, %arg4: memref<32x32xbf16, #tpu.memory_space<vmem>>, %arg5: memref<1x32xf32, #tpu.memory_space<vmem>>, %arg6: memref<32x32xbf16, #tpu.memory_space<vmem>>, %arg7: memref<1x32xf32, #tpu.memory_space<vmem>>, %arg8: memref<32x4xbf16, #tpu.memory_space<vmem>>, %arg9: memref<1x4xf32, #tpu.memory_space<vmem>>, %arg10: memref<8x4xf32, #tpu.memory_space<vmem>>) attributes {dimension_semantics = [#tpu.dimension_semantics<parallel>], iteration_bounds = array<i64: 1>, scalar_prefetch = 0 : i64, scratch_operands = 0 : i64, tpu.core_type = #tpu.core_type<tc>, window_params = [{transform_indices = @transform_0, window_bounds = array<i64: 8, 16>}, {pipeline_mode = #tpu.pipeline_mode<synchronous>, transform_indices = @transform_1, window_bounds = array<i64: 16, 32>}, {pipeline_mode = #tpu.pipeline_mode<synchronous>, transform_indices = @transform_2, window_bounds = array<i64: 1, 32>}, {pipeline_mode = #tpu.pipeline_mode<synchronous>, transform_indices = @transform_3, window_bounds = array<i64: 32, 32>}, {pipeline_mode = #tpu.pipeline_mode<synchronous>, transform_indices = @transform_4, window_bounds = array<i64: 1, 32>}, {pipeline_mode = #tpu.pipeline_mode<synchronous>, transform_indices = @transform_5, window_bounds = array<i64: 32, 32>}, {pipeline_mode = #tpu.pipeline_mode<synchronous>, transform_indices = @transform_6, window_bounds = array<i64: 1, 32>}, {pipeline_mode = #tpu.pipeline_mode<synchronous>, transform_indices = @transform_7, window_bounds = array<i64: 32, 4>}, {pipeline_mode = #tpu.pipeline_mode<synchronous>, transform_indices = @transform_8, window_bounds = array<i64: 1, 4>}, {transform_indices = @transform_9, window_bounds = array<i64: 8, 4>}]} {
    %c0 = arith.constant 0 : index
    %c0_0 = arith.constant 0 : index
    %0 = vector.load %arg1[%c0, %c0_0] : memref<8x16xf32, #tpu.memory_space<vmem>>, vector<8x16xf32>
    %1 = arith.truncf %0 : vector<8x16xf32> to vector<8x16xbf16>
    %c0_1 = arith.constant 0 : index
    %c0_2 = arith.constant 0 : index
    %2 = vector.load %arg2[%c0_1, %c0_2] : memref<16x32xbf16, #tpu.memory_space<vmem>>, vector<16x32xbf16>
    %cst = arith.constant dense<0.000000e+00> : vector<8x32xf32>
    %3 = tpu.matmul %1, %2, %cst {dimension_numbers = #tpu.dot_dimension_numbers<[1], [0], [0], [1], [0, 0, 1, 1], [], []>} : vector<8x16xbf16>, vector<16x32xbf16>, vector<8x32xf32> -> vector<8x32xf32>
    %c0_3 = arith.constant 0 : index
    %c0_4 = arith.constant 0 : index
    %4 = vector.load %arg3[%c0_3, %c0_4] : memref<1x32xf32, #tpu.memory_space<vmem>>, vector<1x32xf32>
    %5 = vector.broadcast %4 : vector<1x32xf32> to vector<8x32xf32>
    %6 = arith.addf %3, %5 : vector<8x32xf32>
    %cst_5 = arith.constant 0.000000e+00 : f32
    %7 = vector.broadcast %cst_5 : f32 to vector<8x32xf32>
    %8 = arith.maximumf %6, %7 : vector<8x32xf32>
    %9 = arith.truncf %8 : vector<8x32xf32> to vector<8x32xbf16>
    %c0_6 = arith.constant 0 : index
    %c0_7 = arith.constant 0 : index
    %10 = vector.load %arg4[%c0_6, %c0_7] : memref<32x32xbf16, #tpu.memory_space<vmem>>, vector<32x32xbf16>
    %cst_8 = arith.constant dense<0.000000e+00> : vector<8x32xf32>
    %11 = tpu.matmul %9, %10, %cst_8 {dimension_numbers = #tpu.dot_dimension_numbers<[1], [0], [0], [1], [0, 0, 1, 1], [], []>} : vector<8x32xbf16>, vector<32x32xbf16>, vector<8x32xf32> -> vector<8x32xf32>
    %c0_9 = arith.constant 0 : index
    %c0_10 = arith.constant 0 : index
    %12 = vector.load %arg5[%c0_9, %c0_10] : memref<1x32xf32, #tpu.memory_space<vmem>>, vector<1x32xf32>
    %13 = vector.broadcast %12 : vector<1x32xf32> to vector<8x32xf32>
    %14 = arith.addf %11, %13 : vector<8x32xf32>
    %cst_11 = arith.constant 0.000000e+00 : f32
    %15 = vector.broadcast %cst_11 : f32 to vector<8x32xf32>
    %16 = arith.maximumf %14, %15 : vector<8x32xf32>
    %17 = arith.truncf %16 : vector<8x32xf32> to vector<8x32xbf16>
    %c0_12 = arith.constant 0 : index
    %c0_13 = arith.constant 0 : index
    %18 = vector.load %arg6[%c0_12, %c0_13] : memref<32x32xbf16, #tpu.memory_space<vmem>>, vector<32x32xbf16>
    %cst_14 = arith.constant dense<0.000000e+00> : vector<8x32xf32>
    %19 = tpu.matmul %17, %18, %cst_14 {dimension_numbers = #tpu.dot_dimension_numbers<[1], [0], [0], [1], [0, 0, 1, 1], [], []>} : vector<8x32xbf16>, vector<32x32xbf16>, vector<8x32xf32> -> vector<8x32xf32>
    %c0_15 = arith.constant 0 : index
    %c0_16 = arith.constant 0 : index
    %20 = vector.load %arg7[%c0_15, %c0_16] : memref<1x32xf32, #tpu.memory_space<vmem>>, vector<1x32xf32>
    %21 = vector.broadcast %20 : vector<1x32xf32> to vector<8x32xf32>
    %22 = arith.addf %19, %21 : vector<8x32xf32>
    %cst_17 = arith.constant 3.000000e+00 : f32
    %23 = vector.broadcast %cst_17 : f32 to vector<8x32xf32>
    %24 = arith.addf %22, %23 : vector<8x32xf32>
    %cst_18 = arith.constant 0.000000e+00 : f32
    %cst_19 = arith.constant 6.000000e+00 : f32
    %25 = vector.broadcast %cst_18 : f32 to vector<8x32xf32>
    %26 = arith.maximumf %25, %24 : vector<8x32xf32>
    %27 = vector.broadcast %cst_19 : f32 to vector<8x32xf32>
    %28 = arith.minimumf %27, %26 : vector<8x32xf32>
    %29 = arith.mulf %22, %28 : vector<8x32xf32>
    %cst_20 = arith.constant 0.166666672 : f32
    %30 = vector.broadcast %cst_20 : f32 to vector<8x32xf32>
    %31 = arith.mulf %29, %30 : vector<8x32xf32>
    %32 = arith.truncf %31 : vector<8x32xf32> to vector<8x32xbf16>
    %c0_21 = arith.constant 0 : index
    %c0_22 = arith.constant 0 : index
    %33 = vector.load %arg8[%c0_21, %c0_22] : memref<32x4xbf16, #tpu.memory_space<vmem>>, vector<32x4xbf16>
    %cst_23 = arith.constant dense<0.000000e+00> : vector<8x4xf32>
    %34 = tpu.matmul %32, %33, %cst_23 {dimension_numbers = #tpu.dot_dimension_numbers<[1], [0], [0], [1], [0, 0, 1, 1], [], []>} : vector<8x32xbf16>, vector<32x4xbf16>, vector<8x4xf32> -> vector<8x4xf32>
    %c0_24 = arith.constant 0 : index
    %c0_25 = arith.constant 0 : index
    %35 = vector.load %arg9[%c0_24, %c0_25] : memref<1x4xf32, #tpu.memory_space<vmem>>, vector<1x4xf32>
    %36 = vector.broadcast %35 : vector<1x4xf32> to vector<8x4xf32>
    %37 = arith.addf %34, %36 : vector<8x4xf32>
    %38 = math.tanh %37 : vector<8x4xf32>
    %c0_26 = arith.constant 0 : index
    %c0_27 = arith.constant 0 : index
    %39 = vector.load %arg10[%c0_26, %c0_27] : memref<8x4xf32, #tpu.memory_space<vmem>>, vector<8x4xf32>
    tpu.vector_store %arg10[%c0_26, %c0_27], %38 {strides = array<i32>} : memref<8x4xf32, #tpu.memory_space<vmem>>, vector<8x4xf32>,
    return
  }
  func.func @transform_0(%arg0: i32) -> (i32, i32) {
    %c0_i32 = arith.constant 0 : i32
    %c0_i32_0 = arith.constant 0 : i32
    return %arg0, %c0_i32 : i32, i32
  }
  func.func @transform_1(%arg0: i32) -> (i32, i32) {
    %c0_i32 = arith.constant 0 : i32
    %c0_i32_0 = arith.constant 0 : i32
    %c0_i32_1 = arith.constant 0 : i32
    return %c0_i32, %c0_i32_0 : i32, i32
  }
  func.func @transform_2(%arg0: i32) -> (i32, i32) {
    %c0_i32 = arith.constant 0 : i32
    %c0_i32_0 = arith.constant 0 : i32
    %c0_i32_1 = arith.constant 0 : i32
    return %c0_i32, %c0_i32_0 : i32, i32
  }
  func.func @transform_3(%arg0: i32) -> (i32, i32) {
    %c0_i32 = arith.constant 0 : i32
    %c0_i32_0 = arith.constant 0 : i32
    %c0_i32_1 = arith.constant 0 : i32
    return %c0_i32, %c0_i32_0 : i32, i32
  }
  func.func @transform_4(%arg0: i32) -> (i32, i32) {
    %c0_i32 = arith.constant 0 : i32
    %c0_i32_0 = arith.constant 0 : i32
    %c0_i32_1 = arith.constant 0 : i32
    return %c0_i32, %c0_i32_0 : i32, i32
  }
  func.func @transform_5(%arg0: i32) -> (i32, i32) {
    %c0_i32 = arith.constant 0 : i32
    %c0_i32_0 = arith.constant 0 : i32
    %c0_i32_1 = arith.constant 0 : i32
    return %c0_i32, %c0_i32_0 : i32, i32
  }
  func.func @transform_6(%arg0: i32) -> (i32, i32) {
    %c0_i32 = arith.constant 0 : i32
    %c0_i32_0 = arith.constant 0 : i32
    %c0_i32_1 = arith.constant 0 : i32
    return %c0_i32, %c0_i32_0 : i32, i32
  }
  func.func @transform_7(%arg0: i32) -> (i32, i32) {
    %c0_i32 = arith.constant 0 : i32
    %c0_i32_0 = arith.constant 0 : i32
    %c0_i32_1 = arith.constant 0 : i32
    return %c0_i32, %c0_i32_0 : i32, i32
  }
  func.func @transform_8(%arg0: i32) -> (i32, i32) {
    %c0_i32 = arith.constant 0 : i32
    %c0_i32_0 = arith.constant 0 : i32
    %c0_i32_1 = arith.constant 0 : i32
    return %c0_i32, %c0_i32_0 : i32, i32
  }
  func.func @transform_9(%arg0: i32) -> (i32, i32) {
    %c0_i32 = arith.constant 0 : i32
    %c0_i32_0 = arith.constant 0 : i32
    return %arg0, %c0_i32 : i32, i32
  }
}

</mosaic_0001>

<llo_original>
// kernel: actor_forward.1
$region0: #{actor_forward.1}
  #allocation0 [shape = 'u32[]', space=smem, size = 0x4, offset = 0x4, fixed_abs, tag = 'smem constant byte address 0x4 - core index']
  #allocation1 [shape = 'u32[144,128]{1,0:T(1,128)}', space=vmem, size = 0x12000, scoped, tag = 'internal scratch']
  %s0 = inlined_call_operand.vmem [shape: f32[8,16], index: 0, kind: input, shape index: {}]
  %s1 = inlined_call_operand.hbm [shape: bf16[16,32], index: 1, kind: input, shape index: {}]
  %s2 = inlined_call_operand.vmem [shape: f32[1,32], index: 2, kind: input, shape index: {}]
  %s3 = inlined_call_operand.vmem [shape: bf16[32,32], index: 3, kind: input, shape index: {}]
  %s4 = inlined_call_operand.vmem [shape: f32[1,32], index: 4, kind: input, shape index: {}]
  %s5 = inlined_call_operand.hbm [shape: bf16[32,32], index: 5, kind: input, shape index: {}]
  %s6 = inlined_call_operand.vmem [shape: f32[1,32], index: 6, kind: input, shape index: {}]
  %s7 = inlined_call_operand.vmem [shape: bf16[32,4], index: 7, kind: input, shape index: {}]
  %s8 = inlined_call_operand.vmem [shape: f32[1,4], index: 8, kind: input, shape index: {}]
  %s9 = inlined_call_operand.vmem [shape: f32[8,4], index: 9, kind: output, shape index: {}]
  %s10 = sld [smem:[#allocation0]]
  $region54: #{actor_forward.1} parent=0
    _
  %s12 = ssub.s32 1, %s10
  %s13 = scalar_select 0, %s12, %s10
  $region1: #{actor_forward.1} parent=0
    #allocation2 [shape = 'u8[4096]{0}', space=vmem, size = 0x1000, scoped, tag = 'input window, operand 1, single buffered']
    #allocation3 [shape = 's32[1]{0}', space=sflag, size = 0x4, scoped, tag = 'scoped memory for actor_forward.1']
    #allocation4 [shape = 'u8[8192]{0}', space=vmem, size = 0x2000, scoped, tag = 'input window, operand 5, single buffered']
    #allocation5 [shape = 's32[1]{0}', space=sflag, size = 0x4, scoped, tag = 'scoped memory for actor_forward.1']
    %14 = vsyncpa [#allocation3], 0
    %15 = vsyncpa [#allocation5], 0
    // Predicated region
    $region2: #{actor_forward.1} parent=1 // pred_check
      _
    $region3: #{actor_forward.1} parent=1 // pred_check_branch
      %17 = sbr.rel (0) target = $region5
    $region4: #{actor_forward.1} parent=1 // pred_region
      _
    $region5: #{actor_forward.1} parent=1 // pred_fallthru
      _
    // Predicated region
    $region6: #{actor_forward.1} parent=1 // pred_check
      _
    $region7: #{actor_forward.1} parent=1 // pred_check_branch
      %19 = sbr.rel (0) target = $region9
    $region8: #{actor_forward.1} parent=1 // pred_region
      %s21 = ssub.s32 128, 128
      %22 = vsyncadd [#allocation3], %s21
      %s23 = sshll.u32 [#allocation2], 4
      %s24 = int_to_ptr.vmem [resolvable:$true] %s23
      %29 = dma.hbm_to_vmem [thread:$0]  %s1, 128, %s24, [#allocation3], 64, 64, 4
    $region9: #{actor_forward.1} parent=1 // pred_fallthru
      _
    // Predicated region
    $region10: #{actor_forward.1} parent=1 // pred_check
      _
    $region11: #{actor_forward.1} parent=1 // pred_check_branch
      %31 = sbr.rel (0) target = $region13
    $region12: #{actor_forward.1} parent=1 // pred_region
      _
    $region13: #{actor_forward.1} parent=1 // pred_fallthru
      _
    // Predicated region
    $region14: #{actor_forward.1} parent=1 // pred_check
      _
    $region15: #{actor_forward.1} parent=1 // pred_check_branch
      %33 = sbr.rel (0) target = $region17
    $region16: #{actor_forward.1} parent=1 // pred_region
      _
    $region17: #{actor_forward.1} parent=1 // pred_fallthru
      _
    // Predicated region
    $region18: #{actor_forward.1} parent=1 // pred_check
      _
    $region19: #{actor_forward.1} parent=1 // pred_check_branch
      %35 = sbr.rel (0) target = $region21
    $region20: #{actor_forward.1} parent=1 // pred_region
      _
    $region21: #{actor_forward.1} parent=1 // pred_fallthru
      _
    // Predicated region
    $region22: #{actor_forward.1} parent=1 // pred_check
      _
    $region23: #{actor_forward.1} parent=1 // pred_check_branch
      %37 = sbr.rel (0) target = $region25
    $region24: #{actor_forward.1} parent=1 // pred_region
      %s39 = ssub.s32 256, 256
      %40 = vsyncadd [#allocation5], %s39
      %s41 = sshll.u32 [#allocation4], 4
      %s42 = int_to_ptr.vmem [resolvable:$true] %s41
      %47 = dma.hbm_to_vmem [thread:$0]  %s5, 256, %s42, [#allocation5], 64, 64, 4
    $region25: #{actor_forward.1} parent=1 // pred_fallthru
      _
    // Predicated region
    $region26: #{actor_forward.1} parent=1 // pred_check
      _
    $region27: #{actor_forward.1} parent=1 // pred_check_branch
      %49 = sbr.rel (0) target = $region29
    $region28: #{actor_forward.1} parent=1 // pred_region
      _
    $region29: #{actor_forward.1} parent=1 // pred_fallthru
      _
    // Predicated region
    $region30: #{actor_forward.1} parent=1 // pred_check
      _
    $region31: #{actor_forward.1} parent=1 // pred_check_branch
      %51 = sbr.rel (0) target = $region33
    $region32: #{actor_forward.1} parent=1 // pred_region
      _
    $region33: #{actor_forward.1} parent=1 // pred_fallthru
      _
    // Predicated region
    $region34: #{actor_forward.1} parent=1 // pred_check
      _
    $region35: #{actor_forward.1} parent=1 // pred_check_branch
      %53 = sbr.rel (0) target = $region37
    $region36: #{actor_forward.1} parent=1 // pred_region
      _
    $region37: #{actor_forward.1} parent=1 // pred_fallthru
      _
    // Predicated region
    $region38: #{actor_forward.1} parent=1 // pred_check
      _
    $region39: #{actor_forward.1} parent=1 // pred_check_branch
      %55 = sbr.rel (0) target = $region41
    $region40: #{actor_forward.1} parent=1 // pred_region
      %56 = dma.done [#allocation3], 128
    $region41: #{actor_forward.1} parent=1 // pred_fallthru
      _
    // Predicated region
    $region42: #{actor_forward.1} parent=1 // pred_check
      _
    $region43: #{actor_forward.1} parent=1 // pred_check_branch
      %58 = sbr.rel (0) target = $region45
    $region44: #{actor_forward.1} parent=1 // pred_region
      %59 = dma.done [#allocation5], 256
    $region45: #{actor_forward.1} parent=1 // pred_fallthru
      _
    %v61 = vld [vmem:[%s0] sm:$0xff]
    %v62 = vpack.c.bf16 %v61, %v61
    %v63 = vld [vmem:[#allocation2] sm:$0xf]
    %v64 = vld [vmem:[#allocation2 + $0x4] sm:$0xf]
    %v65 = vld [vmem:[%s2] sm:$0x1]
    %v67 = vlaneseq
    %v68 = vshrl.u32 %v67, 7
    %v69 = vsub.s32 0, %v68
    %v70 = vrot.slane %v65, %v69
    %v74 = vunpack.c.l.b16 %v63
    %v75 = vunpack.c.l.b16 %v64
    %v76 = vpack.c.b16 %v75, %v74
    %vm78 = vcmask 130048
    %v80 = vsel %vm78, %v62, 0
    %82 = vmatprep.subr.bf16.mxu0 0
    %83 = vmatpush1.bf16.msra.mxu0 0
    %84 = vmatprep.subr.bf16.mxu0 0
    %85 = vmatpush1.bf16.msra.mxu0 0
    %86 = vmatprep.subr.bf16.mxu0 0
    %87 = vmatpush1.bf16.msra.mxu0 0
    %88 = vmatprep.subr.bf16.mxu0 0
    %89 = vmatpush1.bf16.msra.mxu0 0
    %90 = vmatprep.subr.bf16.mxu0 0
    %91 = vmatpush1.bf16.msra.mxu0 0
    %92 = vmatprep.subr.bf16.mxu0 0
    %93 = vmatpush1.bf16.msra.mxu0 0
    %94 = vmatprep.subr.bf16.mxu0 0
    %95 = vmatpush1.bf16.msra.mxu0 0
    %96 = vmatprep.subr.bf16.mxu0 0
    %97 = vmatpush1.bf16.msra.mxu0 %v76
    %98 = vmatprep.subr.bf16.mxu0 0
    %99 = vmatpush2.bf16.msra.mxu0 0
    %100 = vmatprep.subr.bf16.mxu0 0
    %101 = vmatpush2.bf16.msra.mxu0 0
    %102 = vmatprep.subr.bf16.mxu0 0
    %103 = vmatpush2.bf16.msra.mxu0 0
    %104 = vmatprep.subr.bf16.mxu0 0
    %105 = vmatpush2.bf16.msra.mxu0 0
    %106 = vmatprep.subr.bf16.mxu0 0
    %107 = vmatpush2.bf16.msra.mxu0 0
    %108 = vmatprep.subr.bf16.mxu0 0
    %109 = vmatpush2.bf16.msra.mxu0 0
    %110 = vmatprep.subr.bf16.mxu0 0
    %111 = vmatpush2.bf16.msra.mxu0 0
    %112 = vmatprep.subr.bf16.mxu0 0
    %113 = vmatpush2.bf16.msra.mxu0 0
    %114 = vmatprep.mubr.bf16.mxu0 0
    %115 = vmatmul.mubr.bf16.gmra.mxu0 %v80
    %v116 = vpop.f32.mrf.mxu0
    %v117 = vadd.f32 %v70, %v116
    %v118 = vpop.f32.mrf.mxu0
    %v119 = vpop.f32.mrf.mxu0
    %v120 = vpop.f32.mrf.mxu0
    %121 = vdwg.mxu0
    %v122 = vmax.f32 %v117, 0.0
    %v123 = vpack.c.bf16 %v122, %v122
    %v124 = vld [vmem:[%s3] sm:$0xf]
    %v125 = vld [vmem:[%s3 + $0x4] sm:$0xf]
    %v126 = vld [vmem:[%s3 + $0x8] sm:$0xf]
    %v127 = vld [vmem:[%s3 + $0xc] sm:$0xf]
    %v128 = vld [vmem:[%s4] sm:$0x1]
    %v130 = vlaneseq
    %v131 = vshrl.u32 %v130, 7
    %v132 = vsub.s32 0, %v131
    %v133 = vrot.slane %v128, %v132
    %v139 = vunpack.c.l.b16 %v124
    %v140 = vunpack.c.l.b16 %v125
    %v141 = vunpack.c.l.b16 %v126
    %v142 = vunpack.c.l.b16 %v127
    %v143 = vpack.c.b16 %v140, %v139
    %v144 = vpack.c.b16 %v142, %v141
    %vm147 = vcmask 261120
    %v149 = vsel %vm147, %v123, 0
    %151 = vmatprep.subr.bf16.mxu0 0
    %152 = vmatpush1.bf16.msra.mxu0 0
    %153 = vmatprep.subr.bf16.mxu0 0
    %154 = vmatpush1.bf16.msra.mxu0 0
    %155 = vmatprep.subr.bf16.mxu0 0
    %156 = vmatpush1.bf16.msra.mxu0 0
    %157 = vmatprep.subr.bf16.mxu0 0
    %158 = vmatpush1.bf16.msra.mxu0 0
    %159 = vmatprep.subr.bf16.mxu0 0
    %160 = vmatpush1.bf16.msra.mxu0 0
    %161 = vmatprep.subr.bf16.mxu0 0
    %162 = vmatpush1.bf16.msra.mxu0 0
    %163 = vmatprep.subr.bf16.mxu0 0
    %164 = vmatpush1.bf16.msra.mxu0 %v144
    %165 = vmatprep.subr.bf16.mxu0 0
    %166 = vmatpush1.bf16.msra.mxu0 %v143
    %167 = vmatprep.subr.bf16.mxu0 0
    %168 = vmatpush2.bf16.msra.mxu0 0
    %169 = vmatprep.subr.bf16.mxu0 0
    %170 = vmatpush2.bf16.msra.mxu0 0
    %171 = vmatprep.subr.bf16.mxu0 0
    %172 = vmatpush2.bf16.msra.mxu0 0
    %173 = vmatprep.subr.bf16.mxu0 0
    %174 = vmatpush2.bf16.msra.mxu0 0
    %175 = vmatprep.subr.bf16.mxu0 0
    %176 = vmatpush2.bf16.msra.mxu0 0
    %177 = vmatprep.subr.bf16.mxu0 0
    %178 = vmatpush2.bf16.msra.mxu0 0
    %179 = vmatprep.subr.bf16.mxu0 0
    %180 = vmatpush2.bf16.msra.mxu0 0
    %181 = vmatprep.subr.bf16.mxu0 0
    %182 = vmatpush2.bf16.msra.mxu0 0
    %183 = vmatprep.mubr.bf16.mxu0 0
    %184 = vmatmul.mubr.bf16.gmra.mxu0 %v149
    %v185 = vpop.f32.mrf.mxu0
    %v186 = vadd.f32 %v133, %v185
    %v187 = vpop.f32.mrf.mxu0
    %v188 = vpop.f32.mrf.mxu0
    %v189 = vpop.f32.mrf.mxu0
    %190 = vdwg.mxu0
    %v191 = vmax.f32 %v186, 0.0
    %v192 = vpack.c.bf16 %v191, %v191
    %v193 = vld [vmem:[#allocation4] sm:$0xf]
    %v194 = vld [vmem:[#allocation4 + $0x4] sm:$0xf]
    %v195 = vld [vmem:[#allocation4 + $0x8] sm:$0xf]
    %v196 = vld [vmem:[#allocation4 + $0xc] sm:$0xf]
    %v197 = vld [vmem:[%s6] sm:$0x1]
    %v199 = vlaneseq
    %v200 = vshrl.u32 %v199, 7
    %v201 = vsub.s32 0, %v200
    %v202 = vrot.slane %v197, %v201
    %v208 = vunpack.c.l.b16 %v193
    %v209 = vunpack.c.l.b16 %v194
    %v210 = vunpack.c.l.b16 %v195
    %v211 = vunpack.c.l.b16 %v196
    %v212 = vpack.c.b16 %v209, %v208
    %v213 = vpack.c.b16 %v211, %v210
    %v217 = vsel %vm147, %v192, 0
    %219 = vmatprep.subr.bf16.mxu0 0
    %220 = vmatpush1.bf16.msra.mxu0 0
    %221 = vmatprep.subr.bf16.mxu0 0
    %222 = vmatpush1.bf16.msra.mxu0 0
    %223 = vmatprep.subr.bf16.mxu0 0
    %224 = vmatpush1.bf16.msra.mxu0 0
    %225 = vmatprep.subr.bf16.mxu0 0
    %226 = vmatpush1.bf16.msra.mxu0 0
    %227 = vmatprep.subr.bf16.mxu0 0
    %228 = vmatpush1.bf16.msra.mxu0 0
    %229 = vmatprep.subr.bf16.mxu0 0
    %230 = vmatpush1.bf16.msra.mxu0 0
    %231 = vmatprep.subr.bf16.mxu0 0
    %232 = vmatpush1.bf16.msra.mxu0 %v213
    %233 = vmatprep.subr.bf16.mxu0 0
    %234 = vmatpush1.bf16.msra.mxu0 %v212
    %235 = vmatprep.subr.bf16.mxu0 0
    %236 = vmatpush2.bf16.msra.mxu0 0
    %237 = vmatprep.subr.bf16.mxu0 0
    %238 = vmatpush2.bf16.msra.mxu0 0
    %239 = vmatprep.subr.bf16.mxu0 0
    %240 = vmatpush2.bf16.msra.mxu0 0
    %241 = vmatprep.subr.bf16.mxu0 0
    %242 = vmatpush2.bf16.msra.mxu0 0
    %243 = vmatprep.subr.bf16.mxu0 0
    %244 = vmatpush2.bf16.msra.mxu0 0
    %245 = vmatprep.subr.bf16.mxu0 0
    %246 = vmatpush2.bf16.msra.mxu0 0
    %247 = vmatprep.subr.bf16.mxu0 0
    %248 = vmatpush2.bf16.msra.mxu0 0
    %249 = vmatprep.subr.bf16.mxu0 0
    %250 = vmatpush2.bf16.msra.mxu0 0
    %251 = vmatprep.mubr.bf16.mxu0 0
    %252 = vmatmul.mubr.bf16.gmra.mxu0 %v217
    %v253 = vpop.f32.mrf.mxu0
    %v254 = vadd.f32 %v202, %v253
    %v255 = vpop.f32.mrf.mxu0
    %v256 = vpop.f32.mrf.mxu0
    %v257 = vpop.f32.mrf.mxu0
    %258 = vdwg.mxu0
    %v259 = vadd.f32 %v254, 3.0
    %v260 = vmax.f32 %v259, 0.0
    %v261 = vmin.f32 %v260, 6.0
    %v262 = vmul.f32 %v254, %v261
    %v263 = vmul.f32 %v262, 0.16666667
    %v264 = vpack.c.bf16 %v263, %v263
    %v265 = vld [vmem:[%s7] sm:$0xf]
    %v266 = vld [vmem:[%s7 + $0x4] sm:$0xf]
    %v267 = vld [vmem:[%s7 + $0x8] sm:$0xf]
    %v268 = vld [vmem:[%s7 + $0xc] sm:$0xf]
    %v269 = vld [vmem:[%s8] sm:$0x1]
    %v271 = vlaneseq
    %v272 = vshrl.u32 %v271, 7
    %v273 = vsub.s32 0, %v272
    %v274 = vrot.slane %v269, %v273
    %v280 = vunpack.c.l.b16 %v265
    %v281 = vunpack.c.l.b16 %v266
    %v282 = vunpack.c.l.b16 %v267
    %v283 = vunpack.c.l.b16 %v268
    %v284 = vpack.c.b16 %v281, %v280
    %v285 = vpack.c.b16 %v283, %v282
    %v289 = vsel %vm147, %v264, 0
    %291 = vmatprep.subr.bf16.mxu0 0
    %292 = vmatpush1.bf16.msra.mxu0 0
    %293 = vmatprep.subr.bf16.mxu0 0
    %294 = vmatpush1.bf16.msra.mxu0 0
    %295 = vmatprep.subr.bf16.mxu0 0
    %296 = vmatpush1.bf16.msra.mxu0 0
    %297 = vmatprep.subr.bf16.mxu0 0
    %298 = vmatpush1.bf16.msra.mxu0 0
    %299 = vmatprep.subr.bf16.mxu0 0
    %300 = vmatpush1.bf16.msra.mxu0 0
    %301 = vmatprep.subr.bf16.mxu0 0
    %302 = vmatpush1.bf16.msra.mxu0 0
    %303 = vmatprep.subr.bf16.mxu0 0
    %304 = vmatpush1.bf16.msra.mxu0 %v285
    %305 = vmatprep.subr.bf16.mxu0 0
    %306 = vmatpush1.bf16.msra.mxu0 %v284
    %307 = vmatprep.subr.bf16.mxu0 0
    %308 = vmatpush2.bf16.msra.mxu0 0
    %309 = vmatprep.subr.bf16.mxu0 0
    %310 = vmatpush2.bf16.msra.mxu0 0
    %311 = vmatprep.subr.bf16.mxu0 0
    %312 = vmatpush2.bf16.msra.mxu0 0
    %313 = vmatprep.subr.bf16.mxu0 0
    %314 = vmatpush2.bf16.msra.mxu0 0
    %315 = vmatprep.subr.bf16.mxu0 0
    %316 = vmatpush2.bf16.msra.mxu0 0
    %317 = vmatprep.subr.bf16.mxu0 0
    %318 = vmatpush2.bf16.msra.mxu0 0
    %319 = vmatprep.subr.bf16.mxu0 0
    %320 = vmatpush2.bf16.msra.mxu0 0
    %321 = vmatprep.subr.bf16.mxu0 0
    %322 = vmatpush2.bf16.msra.mxu0 0
    %323 = vmatprep.mubr.bf16.mxu0 0
    %324 = vmatmul.mubr.bf16.gmra.mxu0 %v289
    %v325 = vpop.f32.mrf.mxu0
    %v326 = vadd.f32 %v274, %v325
    %v327 = vpop.f32.mrf.mxu0
    %v328 = vpop.f32.mrf.mxu0
    %v329 = vpop.f32.mrf.mxu0
    %330 = vdwg.mxu0
    %v331 = vtanh.pop %v326
    %vm332 = vcmask 31744
    %333 = vst.msk [vmem:[%s9] sm:$0xff] %vm332, %v331
    // Predicated region
    $region46: #{actor_forward.1} parent=1 // pred_check
      _
    $region47: #{actor_forward.1} parent=1 // pred_check_branch
      %335 = sbr.rel (0) target = $region49
    $region48: #{actor_forward.1} parent=1 // pred_region
      _
    $region49: #{actor_forward.1} parent=1 // pred_fallthru
      _
    // Predicated region
    $region50: #{actor_forward.1} parent=1 // pred_check
      _
    $region51: #{actor_forward.1} parent=1 // pred_check_branch
      %337 = sbr.rel (0) target = $region53
    $region52: #{actor_forward.1} parent=1 // pred_region
      _
    $region53: #{actor_forward.1} parent=1 // pred_fallthru
      _
    %338 = vsyncpa [#allocation3], 1
    %339 = vsyncpa [#allocation5], 1

</llo_original>
